<compile_context>
chip_gen: v7x
topology: tpu7x:2x2x1
jax: 0.10.0
libtpu: 0.0.40
codegen_flags: <defaults>
</compile_context>

<pallas_src>
import functools
import math

import jax
import jax.numpy as jnp
from jax.experimental import pallas as pl
from jax.experimental.pallas import tpu as pltpu

EPS = 1e-10
_VMEM_LIMIT_BYTES = 14 * 1024 * 1024    # below v5e's 16 MiB scoped default
_VMEM_BLOCK_BUDGET = 10 * 1024 * 1024   # target: blocks + temporaries per step
_NUM_F32_TEMPS = 4                      # x_f32, x*x, inv_full, product


def _round_up(x, m):
    return ((x + m - 1) // m) * m


def _sublane_multiple(dtype):
    bits = jnp.dtype(dtype).itemsize * 8
    return {32: 8, 16: 16, 8: 32}.get(bits, 8)


def _choose_nb(n, c, sublane_mult):
    """How many consecutive images to fold into the sublane axis of a block."""
    if c >= sublane_mult:
        return 1
    base = sublane_mult // math.gcd(c, sublane_mult)  # smallest nb with nb*c % sm == 0
    if base > n or n % base != 0:
        return 1
    return base


def _choose_tile_hw(hw, rows, itemsize, sublane_mult):
    """Largest lane tile (multiple of 128) whose per-step footprint --
    double-buffered input+output blocks (sublane-PADDED) plus in-kernel f32
    temporaries -- fits the VMEM budget (headroom kept via the 14 MiB limit)."""
    rows_padded = _round_up(rows, sublane_mult)
    bytes_per_lane = rows_padded * (4 * itemsize + 4 * _NUM_F32_TEMPS)
    max_lanes = _VMEM_BLOCK_BUDGET // bytes_per_lane
    max_lanes = max(128, (max_lanes // 128) * 128)
    if hw <= max_lanes:
        return hw   # single full-extent block along the spatial axis (always legal)
    return max_lanes


def _l2norm_kernel(x_ref, w_ref, o_ref, *, nb, c):
    # x_ref: (nb*C, T), w_ref: (nb*C, 1), o_ref: (nb*C, T)
    x = x_ref[...].astype(jnp.float32)
    w = w_ref[...].astype(jnp.float32)
    xx = x * x
    t = xx.shape[-1]
    inv_rows = []
    for g in range(nb):                      # static, small (nb <= sublane mult)
        lo, hi = g * c, (g + 1) * c
        ssq = jnp.sum(xx[lo:hi], axis=0, keepdims=True)          # (1, T)
        # eps added after sqrt, like the PyTorch module; exact reciprocal
        # (agrees with a true divide to ~1 ulp).
        inv = pl.reciprocal(jnp.sqrt(ssq) + EPS)                  # (1, T)
        inv_rows.append(jnp.broadcast_to(inv, (c, t)))
    inv_full = jnp.concatenate(inv_rows, axis=0) if nb > 1 else inv_rows[0]
    o_ref[...] = (x * inv_full * w).astype(o_ref.dtype)


def l2norm(x_nchw, weight):
    """x_nchw: (N, C, H, W), weight: (C,). Returns (N, C, H, W)."""
    n, c, h, w = x_nchw.shape
    hw = h * w
    itemsize = jnp.dtype(x_nchw.dtype).itemsize
    sm = _sublane_multiple(x_nchw.dtype)

    nb = _choose_nb(n, c, sm)
    rows = nb * c
    n_blocks = n // nb

    # Free reshapes only -- (N, C, hw) -> (N//nb, nb*C, hw) just groups
    # consecutive images; no transposes, no extra HBM traffic.
    x3 = x_nchw.reshape(n_blocks, rows, hw)
    w2d = jnp.tile(weight, nb).reshape(rows, 1)

    tile_hw = _choose_tile_hw(hw, rows, itemsize, sm)
    # Keep >=2 grid points when possible so both v7x TensorCores get work
    # (negligible extra per-step overhead on single-TC v5e/v6e).
    if n_blocks * pl.cdiv(hw, tile_hw) < 2 and hw >= 256:
        tile_hw = min(tile_hw, _round_up(pl.cdiv(hw, 2), 128))
    num_hw_tiles = pl.cdiv(hw, tile_hw)      # partial tail handled by Pallas masking
    grid = (n_blocks, num_hw_tiles)

    cost = pl.CostEstimate(
        flops=4 * n * c * hw,
        transcendentals=2 * n * hw,          # sqrt + reciprocal per spatial position
        bytes_accessed=2 * x_nchw.size * itemsize + rows * itemsize,
    )

    kernel = functools.partial(_l2norm_kernel, nb=nb, c=c)

    out3 = pl.pallas_call(
        kernel,
        out_shape=jax.ShapeDtypeStruct((n_blocks, rows, hw), x_nchw.dtype),
        grid_spec=pltpu.PrefetchScalarGridSpec(
            num_scalar_prefetch=0,
            grid=grid,
            in_specs=[
                # (1, nb*C, tile_hw) block; the batch-block dim is squeezed.
                pl.BlockSpec((None, rows, tile_hw), lambda i, j: (i, 0, j)),
                # Per-channel weight (tiled per folded image), grid-resident.
                pl.BlockSpec((rows, 1), lambda i, j: (0, 0)),
            ],
            out_specs=pl.BlockSpec((None, rows, tile_hw), lambda i, j: (i, 0, j)),
        ),
        compiler_params=pltpu.CompilerParams(
            # Both axes independent: megacore sharding on v7x, no-op on v5e/v6e.
            dimension_semantics=("parallel", "parallel"),
            vmem_limit_bytes=_VMEM_LIMIT_BYTES,
        ),
        cost_estimate=cost,
    )(x3, w2d)

    return out3.reshape(n, c, h, w)


if __name__ == "__main__":
    # L2Norm(n_channels=4, scale=20.0) -- weight deterministically init'd to scale
    n_channels = 4
    scale = 20.0
    weight = jnp.full((n_channels,), scale, dtype=jnp.float32)

    key = jax.random.PRNGKey(0)
    x = jax.random.normal(key, (2, n_channels, 16, 16), dtype=jnp.float32)

    out = jax.block_until_ready(l2norm(x, weight))

    # Reference check (plain JAX, same math as the PyTorch module).
    norm = jnp.sqrt(jnp.sum(x * x, axis=1, keepdims=True)) + EPS
    ref = weight[None, :, None, None] * (x / norm)
    assert out.shape == x.shape and out.dtype == x.dtype
    assert jnp.allclose(out, ref, atol=1e-5, rtol=1e-5)

    print("KERNEL_OK")
</pallas_src>

<mosaic_0001>
module attributes {stable_mosaic.version = 11 : i64} {
  func.func @_l2norm_kernel(%arg0: i32, %arg1: i32, %arg2: memref<1x8x128xf32, #tpu.memory_space<vmem>>, %arg3: memref<8x1xf32, #tpu.memory_space<vmem>>, %arg4: memref<1x8x128xf32, #tpu.memory_space<vmem>>) attributes {dimension_semantics = [#tpu.dimension_semantics<parallel>, #tpu.dimension_semantics<parallel>], iteration_bounds = array<i64: 1, 2>, scalar_prefetch = 0 : i64, scratch_operands = 0 : i64, tpu.core_type = #tpu.core_type<tc>, window_params = [{transform_indices = @transform_0, window_bounds = array<i64: 1, 8, 128>}, {pipeline_mode = #tpu.pipeline_mode<synchronous>, transform_indices = @transform_1, window_bounds = array<i64: 8, 1>}, {transform_indices = @transform_2, window_bounds = array<i64: 1, 8, 128>}]} {
    %c0 = arith.constant 0 : index
    %c0_0 = arith.constant 0 : index
    %c0_1 = arith.constant 0 : index
    %0 = vector.load %arg2[%c0, %c0_0, %c0_1] : memref<1x8x128xf32, #tpu.memory_space<vmem>>, vector<1x8x128xf32>
    %1 = vector.shape_cast %0 : vector<1x8x128xf32> to vector<8x128xf32>
    %c0_2 = arith.constant 0 : index
    %c0_3 = arith.constant 0 : index
    %2 = vector.load %arg3[%c0_2, %c0_3] : memref<8x1xf32, #tpu.memory_space<vmem>>, vector<8x1xf32>
    %3 = arith.mulf %1, %1 : vector<8x128xf32>
    %4 = vector.extract_strided_slice %3 {offsets = [0, 0], sizes = [4, 128], strides = [1, 1]} : vector<8x128xf32> to vector<4x128xf32>
    %cst = arith.constant dense<0.000000e+00> : vector<128xf32>
    %5 = vector.multi_reduction <add>, %4, %cst [0] : vector<4x128xf32> to vector<128xf32>
    %6 = vector.shape_cast %5 : vector<128xf32> to vector<1x128xf32>
    %7 = math.sqrt %6 : vector<1x128xf32>
    %cst_4 = arith.constant 1.000000e-10 : f32
    %8 = vector.broadcast %cst_4 : f32 to vector<1x128xf32>
    %9 = arith.addf %7, %8 : vector<1x128xf32>
    %10 = tpu.reciprocal %9 : vector<1x128xf32> -> vector<1x128xf32>
    %11 = vector.shape_cast %10 : vector<1x128xf32> to vector<1x128xf32>
    %12 = vector.broadcast %11 : vector<1x128xf32> to vector<4x128xf32>
    %13 = vector.extract_strided_slice %3 {offsets = [4, 0], sizes = [4, 128], strides = [1, 1]} : vector<8x128xf32> to vector<4x128xf32>
    %cst_5 = arith.constant dense<0.000000e+00> : vector<128xf32>
    %14 = vector.multi_reduction <add>, %13, %cst_5 [0] : vector<4x128xf32> to vector<128xf32>
    %15 = vector.shape_cast %14 : vector<128xf32> to vector<1x128xf32>
    %16 = math.sqrt %15 : vector<1x128xf32>
    %cst_6 = arith.constant 1.000000e-10 : f32
    %17 = vector.broadcast %cst_6 : f32 to vector<1x128xf32>
    %18 = arith.addf %16, %17 : vector<1x128xf32>
    %19 = tpu.reciprocal %18 : vector<1x128xf32> -> vector<1x128xf32>
    %20 = vector.shape_cast %19 : vector<1x128xf32> to vector<1x128xf32>
    %21 = vector.broadcast %20 : vector<1x128xf32> to vector<4x128xf32>
    %22 = tpu.concatenate %12, %21 in 0 : vector<4x128xf32>, vector<4x128xf32> -> vector<8x128xf32>
    %23 = arith.mulf %1, %22 : vector<8x128xf32>
    %24 = vector.broadcast %2 : vector<8x1xf32> to vector<8x128xf32>
    %25 = arith.mulf %23, %24 : vector<8x128xf32>
    %c0_7 = arith.constant 0 : index
    %c0_8 = arith.constant 0 : index
    %c0_9 = arith.constant 0 : index
    %26 = vector.load %arg4[%c0_7, %c0_8, %c0_9] : memref<1x8x128xf32, #tpu.memory_space<vmem>>, vector<1x8x128xf32>
    %27 = vector.shape_cast %26 : vector<1x8x128xf32> to vector<8x128xf32>
    %28 = vector.shape_cast %25 : vector<8x128xf32> to vector<1x8x128xf32>
    tpu.vector_store %arg4[%c0_7, %c0_8, %c0_9], %28 {strides = array<i32>} : memref<1x8x128xf32, #tpu.memory_space<vmem>>, vector<1x8x128xf32>,
    return
  }
  func.func @transform_0(%arg0: i32, %arg1: i32) -> (i32, i32, i32) {
    %c0_i32 = arith.constant 0 : i32
    %c0_i32_0 = arith.constant 0 : i32
    return %arg0, %c0_i32, %arg1 : i32, i32, i32
  }
  func.func @transform_1(%arg0: i32, %arg1: i32) -> (i32, i32) {
    %c0_i32 = arith.constant 0 : i32
    %c0_i32_0 = arith.constant 0 : i32
    %c0_i32_1 = arith.constant 0 : i32
    return %c0_i32, %c0_i32_0 : i32, i32
  }
  func.func @transform_2(%arg0: i32, %arg1: i32) -> (i32, i32, i32) {
    %c0_i32 = arith.constant 0 : i32
    %c0_i32_0 = arith.constant 0 : i32
    return %arg0, %c0_i32, %arg1 : i32, i32, i32
  }
}

</mosaic_0001>

<llo_original>
// kernel: tpu_custom_call.1
$region0: #{tpu_custom_call.1}
  #allocation0 [shape = 'u32[]', space=smem, size = 0x4, offset = 0x4, fixed_abs, tag = 'smem constant byte address 0x4 - core index']
  #allocation1 [shape = 'u32[144,128]{1,0:T(1,128)}', space=vmem, size = 0x12000, scoped, tag = 'internal scratch']
  %s0 = inlined_call_operand.hbm [shape: f32[1,8,256], index: 0, kind: input, shape index: {}]
  %s1 = inlined_call_operand.vmem [shape: f32[8,1], index: 1, kind: input, shape index: {}]
  %s2 = inlined_call_operand.hbm [shape: f32[1,8,256], index: 2, kind: output, shape index: {}]
  %s3 = sld [smem:[#allocation0]]
  $region45: #{tpu_custom_call.1} parent=0
    _
  %s5 = ssub.s32 1, %s3
  %s6 = scalar_select 0, %s5, %s3
  $region1: #{tpu_custom_call.1} parent=0
    #allocation2 [shape = 'u8[8192]{0}', space=vmem, size = 0x2000, scoped, tag = 'input window, operand 0']
    #allocation3 [shape = 's32[2]{0}', space=sflag, size = 0x8, scoped, tag = 'scoped memory for tpu_custom_call.1']
    #allocation4 [shape = 's32[2]{0}', space=sflag, size = 0x8, scoped, tag = 'scoped memory for tpu_custom_call.1']
    #allocation5 [shape = 'u8[8192]{0}', space=vmem, size = 0x2000, scoped, tag = 'output window, operand 0']
    %7 = vsyncpa [#allocation3], 0
    %s8 = scalar_lea.sflag [#allocation3], 1
    %9 = vsyncpa %s8, 0
    %10 = vsyncpa [#allocation4], 0
    %s11 = scalar_lea.sflag [#allocation4], 1
    %12 = vsyncpa %s11, 0
    loop: start=0, step=1, limit=4
    $region2: #{tpu_custom_call.1} parent=1 // loop_pre_header
      _
    $region3: #{tpu_custom_call.1} parent=1 // loop_header
      %s14 = sphi 0, %s18
      %p15 = scmp.ge.s32.totalorder %s14, 4
      %s21 = sphi 0, %s33
      %s22 = sphi 0, %s29
      %s23 = sphi 0, %s21
      %s24 = sphi 0, %s22
      %s25 = sphi 0, %s23
      %s26 = sphi 0, %s24
      %s38 = sphi 0, %s40
      %s41 = sphi 0, %s38
      %s42 = sphi 0, %s41
      %s58 = sphi 0, %s42
      %s62 = sphi 0, %s62
      %s64 = sphi 0, %s62
      %s65 = sphi 0, %s64
      %s79 = sphi 0, %s65
      %s87 = sphi 0, %s89
      %s90 = sphi 0, %s87
      %s91 = sphi 0, %s90
      %s107 = sphi 0, %s91
    $region4: #{tpu_custom_call.1} parent=1 // loop_header_branch
      %17 = sbr.rel (%p15) target = $region8
    $region5: #{tpu_custom_call.1} parent=1 // loop_body
      %s19 = ssub.s32 %s14, 1
      %s20 = ssub.s32 %s14, 2
      %s27 = sadd.s32 1, %s22
      %p28 = scmp.ge.s32.totalorder %s27, 2
      %s29 = scalar_select %p28, 0, %s27
      %s30 = sadd.s32 1, %s21
      %s31 = scalar_select %p28, %s30, %s21
      %p32 = scmp.ge.s32.totalorder %s31, 1
      %s33 = scalar_select %p32, 0, %s31
      %s34 = ssub.s32 %s21, %s33
      %s35 = ssub.s32 %s22, %s29
      %s36 = sor.u32 %s34, %s35
      %p37 = scmp.eq.s32.totalorder %s36, 0
      %s39 = sadd.s32 %s38, 1
      %s40 = scalar_select %p37, %s38, %s39
      %p43 = pneg %p37
      %p44 = scmp.eq.s32.totalorder %s14, 1
      %p45 = por %p43, %p44
      %p46 = scmp.ne.s32.totalorder %s38, %s41
      %p47 = scmp.eq.s32.totalorder %s14, 0
      %p48 = por %p46, %p47
      %p49 = scmp.ne.s32.totalorder %s38, %s41
      %p50 = scmp.eq.s32.totalorder %s19, 1
      %p51 = por %p49, %p50
      %p52 = scmp.ne.s32.totalorder %s41, %s42
      %p53 = scmp.eq.s32.totalorder %s19, 0
      %p54 = por %p52, %p53
      %p55 = scmp.ne.s32.totalorder %s41, %s42
      %p56 = scmp.eq.s32.totalorder %s20, 1
      %p57 = por %p55, %p56
      %p59 = scmp.ne.s32.totalorder %s42, %s58
      %p60 = scmp.eq.s32.totalorder %s20, 0
      %p61 = por %p59, %p60
      %s63 = sadd.s32 %s62, 1
      %p66 = scmp.eq.s32.totalorder %s14, 1
      %p67 = scmp.ne.s32.totalorder %s62, %s64
      %p68 = scmp.eq.s32.totalorder %s14, 0
      %p69 = por %p67, %p68
      %p70 = scmp.ne.s32.totalorder %s62, %s64
      %p71 = scmp.eq.s32.totalorder %s19, 1
      %p72 = por %p70, %p71
      %p73 = scmp.ne.s32.totalorder %s64, %s65
      %p74 = scmp.eq.s32.totalorder %s19, 0
      %p75 = por %p73, %p74
      %p76 = scmp.ne.s32.totalorder %s64, %s65
      %p77 = scmp.eq.s32.totalorder %s20, 1
      %p78 = por %p76, %p77
      %p80 = scmp.ne.s32.totalorder %s65, %s79
      %p81 = scmp.eq.s32.totalorder %s20, 0
      %p82 = por %p80, %p81
      %s83 = ssub.s32 %s21, %s33
      %s84 = ssub.s32 %s22, %s29
      %s85 = sor.u32 %s83, %s84
      %p86 = scmp.eq.s32.totalorder %s85, 0
      %s88 = sadd.s32 %s87, 1
      %s89 = scalar_select %p86, %s87, %s88
      %p92 = pneg %p86
      %p93 = scmp.eq.s32.totalorder %s14, 1
      %p94 = por %p92, %p93
      %p95 = scmp.ne.s32.totalorder %s87, %s90
      %p96 = scmp.eq.s32.totalorder %s14, 0
      %p97 = por %p95, %p96
      %p98 = scmp.ne.s32.totalorder %s87, %s90
      %p99 = scmp.eq.s32.totalorder %s19, 1
      %p100 = por %p98, %p99
      %p101 = scmp.ne.s32.totalorder %s90, %s91
      %p102 = scmp.eq.s32.totalorder %s19, 0
      %p103 = por %p101, %p102
      %p104 = scmp.ne.s32.totalorder %s90, %s91
      %p105 = scmp.eq.s32.totalorder %s20, 1
      %p106 = por %p104, %p105
      %p108 = scmp.ne.s32.totalorder %s91, %s107
      %p109 = scmp.eq.s32.totalorder %s20, 0
      %p110 = por %p108, %p109
      %p111 = scmp.le.s32.totalorder 1, %s14
      %p112 = scmp.lt.s32.totalorder %s14, 3
      %p113 = pnand %p111, %p112
      %p114 = pneg %p113
      // Predicated region
      $region9: #{tpu_custom_call.1} parent=5 // pred_check
        _
      $region10: #{tpu_custom_call.1} parent=5 // pred_check_branch
        %116 = sbr.rel (%p113) target = $region12
      $region11: #{tpu_custom_call.1} parent=5 // pred_region
        %s117 = ssub.s32 %s14, 1
        // Predicated region
        $region13: #{tpu_custom_call.1} parent=11 // pred_check
          %p118 = pneg %p75
        $region14: #{tpu_custom_call.1} parent=11 // pred_check_branch
          %120 = sbr.rel (%p118) target = $region16
        $region15: #{tpu_custom_call.1} parent=11 // pred_region
          _
        $region16: #{tpu_custom_call.1} parent=11 // pred_fallthru
          _
      $region12: #{tpu_custom_call.1} parent=5 // pred_fallthru
        _
      %p121 = scmp.lt.s32.totalorder %s14, 2
      // Predicated region
      $region17: #{tpu_custom_call.1} parent=5 // pred_check
        %p122 = pneg %p121
      $region18: #{tpu_custom_call.1} parent=5 // pred_check_branch
        %124 = sbr.rel (%p122) target = $region20
      $region19: #{tpu_custom_call.1} parent=5 // pred_region
        // Predicated region
        $region21: #{tpu_custom_call.1} parent=19 // pred_check
          %p125 = pneg %p48
        $region22: #{tpu_custom_call.1} parent=19 // pred_check_branch
          %127 = sbr.rel (%p125) target = $region24
        $region23: #{tpu_custom_call.1} parent=19 // pred_region
          %s128 = sand.u32 %s38, 1
          %s129 = scalar_lea.sflag [#allocation3], %s128
          %s130 = sand.u32 %s38, 1
          %s131 = smul.addr %s130, 8
          %s132 = scalar_lea.vmem [#allocation2], %s131
          %s134 = ssub.s32 128, 128
          %135 = vsyncadd %s129, %s134
          %s136 = smul.addr %s21, 2
          %s137 = sadd.s32 %s22, %s136
          %s138 = smul.addr %s137, 128
          %s139 = scalar_lea.hbm %s0, %s138
          %s141 = sshll.u32 %s132, 4
          %s142 = int_to_ptr.vmem [resolvable:$true] %s141
          %144 = dma.hbm_to_vmem [thread:$0]  %s139, 128, %s142, %s129
        $region24: #{tpu_custom_call.1} parent=19 // pred_fallthru
          _
      $region20: #{tpu_custom_call.1} parent=5 // pred_fallthru
        _
      %p145 = scmp.le.s32.totalorder 1, %s14
      %p146 = scmp.lt.s32.totalorder %s14, 3
      %p147 = pnand %p145, %p146
      %p148 = pneg %p147
      // Predicated region
      $region25: #{tpu_custom_call.1} parent=5 // pred_check
        _
      $region26: #{tpu_custom_call.1} parent=5 // pred_check_branch
        %150 = sbr.rel (%p147) target = $region28
      $region27: #{tpu_custom_call.1} parent=5 // pred_region
        %s151 = ssub.s32 %s14, 1
        %s152 = sand.u32 %s41, 1
        %s153 = scalar_lea.sflag [#allocation3], %s152
        %s154 = sand.u32 %s41, 1
        %s155 = smul.addr %s154, 8
        %s156 = scalar_lea.vmem [#allocation2], %s155
        // Predicated region
        $region29: #{tpu_custom_call.1} parent=27 // pred_check
          %p157 = pneg %p54
        $region30: #{tpu_custom_call.1} parent=27 // pred_check_branch
          %159 = sbr.rel (%p157) target = $region32
        $region31: #{tpu_custom_call.1} parent=27 // pred_region
          %160 = dma.done %s153, 128
        $region32: #{tpu_custom_call.1} parent=27 // pred_fallthru
          _
        %s161 = sand.u32 %s41, 1
        %s162 = scalar_lea.sflag [#allocation3], %s161
        %s163 = sand.u32 %s41, 1
        %s164 = smul.addr %s163, 8
        %s165 = scalar_lea.vmem [#allocation2], %s164
        %p166 = pneg %p54
        %p167 = pneg %p51
        %p168 = pneg %p75
        %p169 = pneg %p72
        %p170 = pneg %p103
        %p171 = pneg %p100
        %s172 = sand.u32 %s90, 1
        %s173 = scalar_lea.sflag [#allocation4], %s172
        %s174 = sand.u32 %s90, 1
        %s175 = smul.addr %s174, 8
        %s176 = scalar_lea.vmem [#allocation5], %s175
        %v177 = vld [vmem:[%s156] sm:$0xff]
        %v178 = vld [vmem:[%s1] sm:$0xff]
        %v179 = vmul.f32 %v177, %v177
        %vm180 = vcmask 1043456
        %v181 = vsel %vm180, %v179, 0.0
        %v182 = vrot.slane %v181, 4
        %v183 = vadd.f32 %v181, %v182
        %v184 = vrot.slane %v183, 2
        %v185 = vadd.f32 %v183, %v184
        %v186 = vrot.slane %v185, 1
        %v187 = vadd.f32 %v185, %v186
        %v188 = vrsqrt.pop %v187
        %v189 = vmul.f32 %v187, %v188
        %vm190 = vcmp.eq.f32.partialorder %v187, inf
        %v191 = vsel %vm190, %v187, %v189
        %vm192 = vcmp.eq.f32.partialorder %v187, 0.0
        %v193 = vand.u32 %v187, 2147483648
        %v194 = vsel %vm192, %v193, %v191
        %v195 = vadd.f32 %v194, 1e-10
        %v196 = vrcp.pop %v195
        %v198 = vrot.slane %v179, 4
        %v200 = vsel %vm180, %v198, 0.0
        %v201 = vrot.slane %v200, 4
        %v202 = vadd.f32 %v200, %v201
        %v203 = vrot.slane %v202, 2
        %v204 = vadd.f32 %v202, %v203
        %v205 = vrot.slane %v204, 1
        %v206 = vadd.f32 %v204, %v205
        %v207 = vrsqrt.pop %v206
        %v208 = vmul.f32 %v206, %v207
        %vm209 = vcmp.eq.f32.partialorder %v206, inf
        %v210 = vsel %vm209, %v206, %v208
        %vm211 = vcmp.eq.f32.partialorder %v206, 0.0
        %v212 = vand.u32 %v206, 2147483648
        %v213 = vsel %vm211, %v212, %v210
        %v214 = vadd.f32 %v213, 1e-10
        %v215 = vrcp.pop %v214
        %v216 = vsel %vm180, %v196, %v215
        %v217 = vmul.f32 %v177, %v216
        %219 = vset.pattern.permute.xlu0 0
        %220 = vperm.xlu0 %219, %v178
        %v221 = vpop.permute.xlu0 %220
        %v223 = vmul.f32 %v217, %v221
        %224 = vst [vmem:[%s176] sm:$0xff] %v223
        %s225 = sand.u32 %s90, 1
        %s226 = scalar_lea.sflag [#allocation4], %s225
        %s227 = sand.u32 %s90, 1
        %s228 = smul.addr %s227, 8
        %s229 = scalar_lea.vmem [#allocation5], %s228
        // Predicated region
        $region33: #{tpu_custom_call.1} parent=27 // pred_check
          %p230 = pneg %p100
        $region34: #{tpu_custom_call.1} parent=27 // pred_check_branch
          %232 = sbr.rel (%p230) target = $region36
        $region35: #{tpu_custom_call.1} parent=27 // pred_region
          %s234 = ssub.s32 128, 128
          %235 = vsyncadd %s226, %s234
          %s236 = smul.addr %s23, 2
          %s237 = sadd.s32 %s24, %s236
          %s238 = smul.addr %s237, 128
          %s239 = scalar_lea.hbm %s2, %s238
          %s241 = sshll.u32 %s229, 4
          %s242 = int_to_ptr.vmem [resolvable:$true] %s241
          %244 = dma.vmem_to_hbm [thread:$0]  %s242, 128, %s239, %s226
        $region36: #{tpu_custom_call.1} parent=27 // pred_fallthru
          _
      $region28: #{tpu_custom_call.1} parent=5 // pred_fallthru
        _
      %p245 = scmp.le.s32.totalorder 2, %s14
      // Predicated region
      $region37: #{tpu_custom_call.1} parent=5 // pred_check
        %p246 = pneg %p245
      $region38: #{tpu_custom_call.1} parent=5 // pred_check_branch
        %248 = sbr.rel (%p246) target = $region40
      $region39: #{tpu_custom_call.1} parent=5 // pred_region
        %s249 = ssub.s32 %s14, 2
        // Predicated region
        $region41: #{tpu_custom_call.1} parent=39 // pred_check
          %p250 = pneg %p106
        $region42: #{tpu_custom_call.1} parent=39 // pred_check_branch
          %252 = sbr.rel (%p250) target = $region44
        $region43: #{tpu_custom_call.1} parent=39 // pred_region
          %s253 = sand.u32 %s91, 1
          %s254 = scalar_lea.sflag [#allocation4], %s253
          %s255 = sand.u32 %s91, 1
          %s256 = smul.addr %s255, 8
          %s257 = scalar_lea.vmem [#allocation5], %s256
          %258 = dma.done %s254, 128
        $region44: #{tpu_custom_call.1} parent=39 // pred_fallthru
          _
      $region40: #{tpu_custom_call.1} parent=5 // pred_fallthru
        _
    $region6: #{tpu_custom_call.1} parent=1 // loop_footer
      %s18 = sadd.s32 1, %s14
    $region7: #{tpu_custom_call.1} parent=1 // loop_footer_branch
      %13 = sbr.rel target = $region3
    $region8: #{tpu_custom_call.1} parent=1 // loop_exit
      _
    %259 = vsyncpa [#allocation3], 1
    %s260 = scalar_lea.sflag [#allocation3], 1
    %261 = vsyncpa %s260, 1
    %262 = vsyncpa [#allocation4], 1
    %s263 = scalar_lea.sflag [#allocation4], 1
    %264 = vsyncpa %s263, 1

</llo_original>
